<compile_context>
chip_gen: v7x
topology: tpu7x:2x2x1
jax: 0.10.0
libtpu: 0.0.40
codegen_flags: <defaults>
</compile_context>

<pallas_src>
import math

import jax
import jax.numpy as jnp
from jax import lax
from jax.experimental import pallas as pl
from jax.experimental.pallas import tpu as pltpu

_EPS = 1e-5  # PyTorch BatchNorm2d default eps


def _spatial_attention_kernel(ident_ref, patches_ref, w1_ref, w2_ref,
                              bn1_ref, bn2_ref, prelu_ref, o_ref):
    # Layout: channels on sublanes, (position, batch) on lanes.
    C, B = o_ref.shape                      # (input_c, batch)
    n_tap = patches_ref.shape[0]            # 4 taps of the 2x2 maxpool1 window
    cols = patches_ref.shape[2]             # n_win * B
    n_win = cols // B                       # 4 pool windows == conv2 input positions

    a1 = prelu_ref[0]                       # PReLU slopes (scalars, SMEM)
    a2 = prelu_ref[1]
    w1 = w1_ref[...]                        # (2C, 9C)

    # ---- conv1 (3x3 / stride 2 / pad 1): one matmul per pool tap.  Tap is a
    #      leading (major) dim -> pool1 / BN1 need no lane or sublane shuffles.
    #      (conv1 bias dropped: cancelled exactly by the BN1 batch mean.) ------
    y1 = [jnp.dot(w1, patches_ref[t], preferred_element_type=jnp.float32)
          for t in range(n_tap)]                                  # 4 x (2C, 4B) f32

    # ---- bn1: training-mode batch stats, single pass (sum & sum-of-squares) --
    s1 = (y1[0] + y1[1]) + (y1[2] + y1[3])
    q1 = (y1[0] * y1[0] + y1[1] * y1[1]) + (y1[2] * y1[2] + y1[3] * y1[3])
    inv_n1 = 1.0 / float(n_tap * cols)                            # 1 / (16 * B)
    mean1 = jnp.sum(s1, axis=1, keepdims=True) * inv_n1           # (2C, 1)
    var1 = jnp.sum(q1, axis=1, keepdims=True) * inv_n1 - mean1 * mean1
    scale1 = bn1_ref[0] * lax.rsqrt(var1 + _EPS)                  # gamma1 / std
    shift1 = bn1_ref[1] - mean1 * scale1                          # beta1 - mean*scale
    y1n = [t_ * scale1 + shift1 for t_ in y1]

    # ---- maxpool1 (2x2 / 2) over the leading tap axis + PReLU1 ----------------
    m1 = jnp.maximum(jnp.maximum(y1n[0], y1n[1]), jnp.maximum(y1n[2], y1n[3]))
    z = jnp.where(m1 > 0, m1, a1 * m1)                            # (2C, n_win*B)

    # ---- conv2 (3x3 / pad 1 on the 2x2 map): accumulated sum of 4 dots, one
    #      per input position (no lane concat); all 4 output positions stacked
    #      on sublanes of the result.  conv2 bias dropped (cancels in BN2). ----
    y2 = jnp.dot(w2_ref[0], z[:, 0:B], preferred_element_type=jnp.float32)
    for q in range(1, n_win):
        y2 = y2 + jnp.dot(w2_ref[q], z[:, q * B:(q + 1) * B],
                          preferred_element_type=jnp.float32)     # (4C, B) f32

    # ---- bn2 (batch stats over batch x 4 output positions), single pass ------
    y2p = [y2[p * C:(p + 1) * C, :] for p in range(4)]            # 4 x (C, B)
    s2 = (y2p[0] + y2p[1]) + (y2p[2] + y2p[3])
    q2 = (y2p[0] * y2p[0] + y2p[1] * y2p[1]) + (y2p[2] * y2p[2] + y2p[3] * y2p[3])
    inv_n2 = 1.0 / float(4 * B)
    mean2 = jnp.sum(s2, axis=1, keepdims=True) * inv_n2           # (C, 1)
    var2 = jnp.sum(q2, axis=1, keepdims=True) * inv_n2 - mean2 * mean2
    scale2 = bn2_ref[0] * lax.rsqrt(var2 + _EPS)
    shift2 = bn2_ref[1] - mean2 * scale2
    y2n = [p_ * scale2 + shift2 for p_ in y2p]

    # ---- maxpool2 (2x2 -> 1x1) + PReLU2 + residual fuse -----------------------
    m2 = jnp.maximum(jnp.maximum(y2n[0], y2n[1]), jnp.maximum(y2n[2], y2n[3]))
    out = jnp.where(m2 > 0, m2, a2 * m2)                          # (C, B)
    ident = ident_ref[...]
    o_ref[...] = ident * out + ident                              # lane-dense store


def spatial_attention_forward(x, params):
    """x: (B, 1, C, P, P) float32 — same layout the PyTorch module receives."""
    x = jnp.squeeze(x, axis=1)                                    # (B, C, H, W)
    B, C, H, W = x.shape
    assert H == W == 8, "specialized to patch_size=8 (final spatial collapses to 1x1)"
    dx = H // 2

    ident_t = x[:, :, dx, dx].T.astype(jnp.float32)               # (C, B), lane-dense
    # (H, W, C) major, batch on the minor (lane) axis; pad=1 for conv1.
    xpad = jnp.pad(jnp.transpose(x, (2, 3, 1, 0)).astype(jnp.float32),
                   ((1, 1), (1, 1), (0, 0), (0, 0)))              # (10, 10, C, B)

    # im2col for the strided conv1, already transposed for the kernel layout:
    #   patches[t, kh*3C + kw*C + ci, q*B + b] = xpad[2*ho + kh, 2*wo + kw, ci, b]
    # t = tap inside a 2x2 pool window, q = pool window (== conv2 input position).
    # TODO(synk): move im2col in-kernel (per batch tile) once a grid exists to
    # avoid the HBM round trip of the largest array.
    tap_blocks = []
    for t in range(4):
        dh, dw = divmod(t, 2)
        win_blocks = []
        for q in range(4):
            ph, pw = divmod(q, 2)
            ho, wo = 2 * ph + dh, 2 * pw + dw                     # conv1 output position
            win_blocks.append(
                xpad[2 * ho:2 * ho + 3, 2 * wo:2 * wo + 3].reshape(9 * C, B))
        tap_blocks.append(jnp.concatenate(win_blocks, axis=1))    # (9C, 4B)
    patches = jnp.stack(tap_blocks, axis=0)                       # (4, 9C, 4B) f32

    # conv1 weight: OIHW -> (co, kh, kw, ci) -> (2C, 9C), f32 (MXU is idle here)
    w1m = jnp.transpose(params["w1"], (0, 2, 3, 1)).reshape(2 * C, 9 * C)
    w1m = w1m.astype(jnp.float32)

    # conv2 weights: w2q[q] maps input position q=(h,w) to all 4 output
    # positions stacked on rows: block po=(ho,wo) is w2[:, :, h-ho+1, w-wo+1].
    w2q_list = []
    for q in range(4):
        h, w = divmod(q, 2)
        blocks = []
        for po in range(4):
            ho, wo = divmod(po, 2)
            blocks.append(params["w2"][:, :, h - ho + 1, w - wo + 1])   # (C, 2C)
        w2q_list.append(jnp.concatenate(blocks, axis=0))                # (4C, 2C)
    w2q = jnp.stack(w2q_list, axis=0).astype(jnp.float32)               # (4, 4C, 2C)

    # BN affine params as column vectors (channels on sublanes).  Conv biases
    # are intentionally NOT passed: a per-channel constant before training-mode
    # BN is exactly cancelled by the batch mean (dead work).
    bn1 = jnp.stack([params["g1"], params["be1"]]).astype(jnp.float32)[:, :, None]  # (2, 2C, 1)
    bn2 = jnp.stack([params["g2"], params["be2"]]).astype(jnp.float32)[:, :, None]  # (2, C, 1)
    prelu = jnp.concatenate([params["a1"], params["a2"]]).astype(jnp.float32)       # (2,)

    vmem_spec = pl.BlockSpec(memory_space=pltpu.MemorySpace.VMEM)
    smem_spec = pl.BlockSpec(memory_space=pltpu.MemorySpace.SMEM)

    # Shape-derived VMEM budget (clamped to v7x's 64 MiB physical; v5e/v6e have
    # 128 MiB so the clamp is conservative there).
    in_bytes = sum(int(a.size) * a.dtype.itemsize
                   for a in (ident_t, patches, w1m, w2q, bn1, bn2))
    inter_bytes = 16 * (2 * C) * (4 * B) * 4        # f32 conv1-stage intermediates
    vmem_limit = int(min(max(4 * (in_bytes + inter_bytes) + (2 << 20), 16 << 20),
                         64 << 20))

    out_t = pl.pallas_call(
        _spatial_attention_kernel,
        out_shape=jax.ShapeDtypeStruct((C, B), jnp.float32),
        in_specs=[vmem_spec] * 6 + [smem_spec],
        out_specs=vmem_spec,
        compiler_params=pltpu.CompilerParams(vmem_limit_bytes=vmem_limit),
    )(ident_t, patches, w1m, w2q, bn1, bn2, prelu)

    # PyTorch epilogue: (B,C,1,1) -> permute(0,2,1,3) -> (B,1,C,1) -> squeeze(3)
    return out_t.T[:, None, :]                                    # (B, 1, C)


def _reference_forward(x5, params):
    """Pure-JAX reference mirroring the PyTorch forward (training-mode BN)."""
    x = jnp.squeeze(x5, axis=1)
    dx = x.shape[2] // 2
    identity = x[:, :, dx, dx][:, :, None, None]

    def conv(h, w, b, stride):
        y = lax.conv_general_dilated(h, w, (stride, stride), ((1, 1), (1, 1)),
                                     dimension_numbers=("NCHW", "OIHW", "NCHW"),
                                     precision=lax.Precision.HIGHEST)
        return y + b[None, :, None, None]

    def bn(h, g, be):
        mean = h.mean(axis=(0, 2, 3), keepdims=True)
        var = ((h - mean) ** 2).mean(axis=(0, 2, 3), keepdims=True)
        return (h - mean) / jnp.sqrt(var + _EPS) * g[None, :, None, None] + be[None, :, None, None]

    def pool(h):
        return lax.reduce_window(h, -jnp.inf, lax.max, (1, 1, 2, 2), (1, 1, 2, 2), "VALID")

    def prelu(h, a):
        return jnp.where(h > 0, h, a * h)

    y = prelu(pool(bn(conv(x, params["w1"], params["b1"], 2), params["g1"], params["be1"])),
              params["a1"])
    y = prelu(pool(bn(conv(y, params["w2"], params["b2"], 1), params["g2"], params["be2"])),
              params["a2"])
    out = identity * y + identity
    return jnp.squeeze(jnp.transpose(out, (0, 2, 1, 3)), axis=3)


if __name__ == "__main__":
    B, C, P = 2, 4, 8  # batch, input_c, patch_size
    key = jax.random.PRNGKey(0)
    kx, kw1, kw2, kb1, kb2, kg1, kg2, kbe1, kbe2 = jax.random.split(key, 9)

    # Deterministic synthetic parameters.  Conv biases / BN affines are made
    # non-trivial on purpose: the kernel drops the conv biases (they cancel
    # against the training-mode BN batch mean), and the test verifies that.
    params = {
        "w1": jax.random.normal(kw1, (2 * C, C, 3, 3), jnp.float32) * math.sqrt(2.0 / (C * 9)),
        "b1": jax.random.normal(kb1, (2 * C,), jnp.float32) * 0.3,
        "g1": 1.0 + 0.2 * jax.random.normal(kg1, (2 * C,), jnp.float32),
        "be1": 0.2 * jax.random.normal(kbe1, (2 * C,), jnp.float32),
        "a1": jnp.full((1,), 0.25, jnp.float32),
        "w2": jax.random.normal(kw2, (C, 2 * C, 3, 3), jnp.float32) * math.sqrt(2.0 / (2 * C * 9)),
        "b2": jax.random.normal(kb2, (C,), jnp.float32) * 0.3,
        "g2": 1.0 + 0.2 * jax.random.normal(kg2, (C,), jnp.float32),
        "be2": 0.2 * jax.random.normal(kbe2, (C,), jnp.float32),
        "a2": jnp.full((1,), 0.25, jnp.float32),
    }

    x = jax.random.normal(kx, (B, 1, C, P, P), jnp.float32)

    out = jax.block_until_ready(spatial_attention_forward(x, params))
    ref = jax.block_until_ready(_reference_forward(x, params))

    assert out.shape == (B, 1, C), out.shape
    # f32 MXU operands (bf16 casts removed) -> tighter tolerance than v2's 3e-2
    assert jnp.allclose(out, ref, atol=1e-2, rtol=1e-2), (out, ref)
    print("KERNEL_OK")
</pallas_src>

<mosaic_0001>
module attributes {stable_mosaic.version = 11 : i64} {
  func.func @_spatial_attention_kernel(%arg0: memref<4x2xf32, #tpu.memory_space<vmem>>, %arg1: memref<4x36x8xf32, #tpu.memory_space<vmem>>, %arg2: memref<8x36xf32, #tpu.memory_space<vmem>>, %arg3: memref<4x16x8xf32, #tpu.memory_space<vmem>>, %arg4: memref<2x8x1xf32, #tpu.memory_space<vmem>>, %arg5: memref<2x4x1xf32, #tpu.memory_space<vmem>>, %arg6: memref<2xf32, #tpu.memory_space<smem>>, %arg7: memref<4x2xf32, #tpu.memory_space<vmem>>) attributes {dimension_semantics = [], scalar_prefetch = 0 : i64, scratch_operands = 0 : i64, tpu.core_type = #tpu.core_type<tc>} {
    %c0 = arith.constant 0 : index
    %0 = memref.load %arg6[%c0] : memref<2xf32, #tpu.memory_space<smem>>
    %c1 = arith.constant 1 : index
    %1 = memref.load %arg6[%c1] : memref<2xf32, #tpu.memory_space<smem>>
    %c0_0 = arith.constant 0 : index
    %c0_1 = arith.constant 0 : index
    %2 = vector.load %arg2[%c0_0, %c0_1] : memref<8x36xf32, #tpu.memory_space<vmem>>, vector<8x36xf32>
    %c0_2 = arith.constant 0 : index
    %c0_3 = arith.constant 0 : index
    %c0_4 = arith.constant 0 : index
    %3 = vector.load %arg1[%c0_2, %c0_3, %c0_4] : memref<4x36x8xf32, #tpu.memory_space<vmem>>, vector<1x36x8xf32>
    %4 = vector.shape_cast %3 : vector<1x36x8xf32> to vector<36x8xf32>
    %cst = arith.constant dense<0.000000e+00> : vector<8x8xf32>
    %5 = tpu.matmul %2, %4, %cst {dimension_numbers = #tpu.dot_dimension_numbers<[1], [0], [0], [1], [0, 0, 1, 1], [], []>} : vector<8x36xf32>, vector<36x8xf32>, vector<8x8xf32> -> vector<8x8xf32>
    %c1_5 = arith.constant 1 : index
    %c0_6 = arith.constant 0 : index
    %c0_7 = arith.constant 0 : index
    %6 = vector.load %arg1[%c1_5, %c0_6, %c0_7] : memref<4x36x8xf32, #tpu.memory_space<vmem>>, vector<1x36x8xf32>
    %7 = vector.shape_cast %6 : vector<1x36x8xf32> to vector<36x8xf32>
    %cst_8 = arith.constant dense<0.000000e+00> : vector<8x8xf32>
    %8 = tpu.matmul %2, %7, %cst_8 {dimension_numbers = #tpu.dot_dimension_numbers<[1], [0], [0], [1], [0, 0, 1, 1], [], []>} : vector<8x36xf32>, vector<36x8xf32>, vector<8x8xf32> -> vector<8x8xf32>
    %c2 = arith.constant 2 : index
    %c0_9 = arith.constant 0 : index
    %c0_10 = arith.constant 0 : index
    %9 = vector.load %arg1[%c2, %c0_9, %c0_10] : memref<4x36x8xf32, #tpu.memory_space<vmem>>, vector<1x36x8xf32>
    %10 = vector.shape_cast %9 : vector<1x36x8xf32> to vector<36x8xf32>
    %cst_11 = arith.constant dense<0.000000e+00> : vector<8x8xf32>
    %11 = tpu.matmul %2, %10, %cst_11 {dimension_numbers = #tpu.dot_dimension_numbers<[1], [0], [0], [1], [0, 0, 1, 1], [], []>} : vector<8x36xf32>, vector<36x8xf32>, vector<8x8xf32> -> vector<8x8xf32>
    %c3 = arith.constant 3 : index
    %c0_12 = arith.constant 0 : index
    %c0_13 = arith.constant 0 : index
    %12 = vector.load %arg1[%c3, %c0_12, %c0_13] : memref<4x36x8xf32, #tpu.memory_space<vmem>>, vector<1x36x8xf32>
    %13 = vector.shape_cast %12 : vector<1x36x8xf32> to vector<36x8xf32>
    %cst_14 = arith.constant dense<0.000000e+00> : vector<8x8xf32>
    %14 = tpu.matmul %2, %13, %cst_14 {dimension_numbers = #tpu.dot_dimension_numbers<[1], [0], [0], [1], [0, 0, 1, 1], [], []>} : vector<8x36xf32>, vector<36x8xf32>, vector<8x8xf32> -> vector<8x8xf32>
    %15 = arith.addf %5, %8 : vector<8x8xf32>
    %16 = arith.addf %11, %14 : vector<8x8xf32>
    %17 = arith.addf %15, %16 : vector<8x8xf32>
    %18 = arith.mulf %5, %5 : vector<8x8xf32>
    %19 = arith.mulf %8, %8 : vector<8x8xf32>
    %20 = arith.addf %18, %19 : vector<8x8xf32>
    %21 = arith.mulf %11, %11 : vector<8x8xf32>
    %22 = arith.mulf %14, %14 : vector<8x8xf32>
    %23 = arith.addf %21, %22 : vector<8x8xf32>
    %24 = arith.addf %20, %23 : vector<8x8xf32>
    %cst_15 = arith.constant dense<0.000000e+00> : vector<8xf32>
    %25 = vector.multi_reduction <add>, %17, %cst_15 [1] : vector<8x8xf32> to vector<8xf32>
    %26 = vector.shape_cast %25 : vector<8xf32> to vector<8x1xf32>
    %cst_16 = arith.constant 3.125000e-02 : f32
    %27 = vector.broadcast %cst_16 : f32 to vector<8x1xf32>
    %28 = arith.mulf %26, %27 : vector<8x1xf32>
    %cst_17 = arith.constant dense<0.000000e+00> : vector<8xf32>
    %29 = vector.multi_reduction <add>, %24, %cst_17 [1] : vector<8x8xf32> to vector<8xf32>
    %30 = vector.shape_cast %29 : vector<8xf32> to vector<8x1xf32>
    %cst_18 = arith.constant 3.125000e-02 : f32
    %31 = vector.broadcast %cst_18 : f32 to vector<8x1xf32>
    %32 = arith.mulf %30, %31 : vector<8x1xf32>
    %33 = arith.mulf %28, %28 : vector<8x1xf32>
    %34 = arith.subf %32, %33 : vector<8x1xf32>
    %c0_19 = arith.constant 0 : index
    %c0_20 = arith.constant 0 : index
    %c0_21 = arith.constant 0 : index
    %35 = vector.load %arg4[%c0_19, %c0_20, %c0_21] : memref<2x8x1xf32, #tpu.memory_space<vmem>>, vector<1x8x1xf32>
    %36 = vector.shape_cast %35 : vector<1x8x1xf32> to vector<8x1xf32>
    %cst_22 = arith.constant 9.99999974E-6 : f32
    %37 = vector.broadcast %cst_22 : f32 to vector<8x1xf32>
    %38 = arith.addf %34, %37 : vector<8x1xf32>
    %39 = math.rsqrt %38 : vector<8x1xf32>
    %40 = arith.mulf %36, %39 : vector<8x1xf32>
    %c1_23 = arith.constant 1 : index
    %c0_24 = arith.constant 0 : index
    %c0_25 = arith.constant 0 : index
    %41 = vector.load %arg4[%c1_23, %c0_24, %c0_25] : memref<2x8x1xf32, #tpu.memory_space<vmem>>, vector<1x8x1xf32>
    %42 = vector.shape_cast %41 : vector<1x8x1xf32> to vector<8x1xf32>
    %43 = arith.mulf %28, %40 : vector<8x1xf32>
    %44 = arith.subf %42, %43 : vector<8x1xf32>
    %45 = vector.broadcast %40 : vector<8x1xf32> to vector<8x8xf32>
    %46 = arith.mulf %5, %45 : vector<8x8xf32>
    %47 = vector.broadcast %44 : vector<8x1xf32> to vector<8x8xf32>
    %48 = arith.addf %46, %47 : vector<8x8xf32>
    %49 = vector.broadcast %40 : vector<8x1xf32> to vector<8x8xf32>
    %50 = arith.mulf %8, %49 : vector<8x8xf32>
    %51 = vector.broadcast %44 : vector<8x1xf32> to vector<8x8xf32>
    %52 = arith.addf %50, %51 : vector<8x8xf32>
    %53 = vector.broadcast %40 : vector<8x1xf32> to vector<8x8xf32>
    %54 = arith.mulf %11, %53 : vector<8x8xf32>
    %55 = vector.broadcast %44 : vector<8x1xf32> to vector<8x8xf32>
    %56 = arith.addf %54, %55 : vector<8x8xf32>
    %57 = vector.broadcast %40 : vector<8x1xf32> to vector<8x8xf32>
    %58 = arith.mulf %14, %57 : vector<8x8xf32>
    %59 = vector.broadcast %44 : vector<8x1xf32> to vector<8x8xf32>
    %60 = arith.addf %58, %59 : vector<8x8xf32>
    %61 = arith.maximumf %48, %52 : vector<8x8xf32>
    %62 = arith.maximumf %56, %60 : vector<8x8xf32>
    %63 = arith.maximumf %61, %62 : vector<8x8xf32>
    %cst_26 = arith.constant 0.000000e+00 : f32
    %64 = vector.broadcast %cst_26 : f32 to vector<8x8xf32>
    %65 = arith.cmpf ogt, %63, %64 : vector<8x8xf32>
    %66 = vector.broadcast %0 : f32 to vector<8x8xf32>
    %67 = arith.mulf %66, %63 : vector<8x8xf32>
    %68 = arith.select %65, %63, %67 : vector<8x8xi1>, vector<8x8xf32>
    %c0_27 = arith.constant 0 : index
    %c0_28 = arith.constant 0 : index
    %c0_29 = arith.constant 0 : index
    %69 = vector.load %arg3[%c0_27, %c0_28, %c0_29] : memref<4x16x8xf32, #tpu.memory_space<vmem>>, vector<1x16x8xf32>
    %70 = vector.shape_cast %69 : vector<1x16x8xf32> to vector<16x8xf32>
    %71 = vector.extract_strided_slice %68 {offsets = [0, 0], sizes = [8, 2], strides = [1, 1]} : vector<8x8xf32> to vector<8x2xf32>
    %cst_30 = arith.constant dense<0.000000e+00> : vector<16x2xf32>
    %72 = tpu.matmul %70, %71, %cst_30 {dimension_numbers = #tpu.dot_dimension_numbers<[1], [0], [0], [1], [0, 0, 1, 1], [], []>} : vector<16x8xf32>, vector<8x2xf32>, vector<16x2xf32> -> vector<16x2xf32>
    %c1_31 = arith.constant 1 : index
    %c0_32 = arith.constant 0 : index
    %c0_33 = arith.constant 0 : index
    %73 = vector.load %arg3[%c1_31, %c0_32, %c0_33] : memref<4x16x8xf32, #tpu.memory_space<vmem>>, vector<1x16x8xf32>
    %74 = vector.shape_cast %73 : vector<1x16x8xf32> to vector<16x8xf32>
    %75 = vector.extract_strided_slice %68 {offsets = [0, 2], sizes = [8, 2], strides = [1, 1]} : vector<8x8xf32> to vector<8x2xf32>
    %cst_34 = arith.constant dense<0.000000e+00> : vector<16x2xf32>
    %76 = tpu.matmul %74, %75, %cst_34 {dimension_numbers = #tpu.dot_dimension_numbers<[1], [0], [0], [1], [0, 0, 1, 1], [], []>} : vector<16x8xf32>, vector<8x2xf32>, vector<16x2xf32> -> vector<16x2xf32>
    %77 = arith.addf %72, %76 : vector<16x2xf32>
    %c2_35 = arith.constant 2 : index
    %c0_36 = arith.constant 0 : index
    %c0_37 = arith.constant 0 : index
    %78 = vector.load %arg3[%c2_35, %c0_36, %c0_37] : memref<4x16x8xf32, #tpu.memory_space<vmem>>, vector<1x16x8xf32>
    %79 = vector.shape_cast %78 : vector<1x16x8xf32> to vector<16x8xf32>
    %80 = vector.extract_strided_slice %68 {offsets = [0, 4], sizes = [8, 2], strides = [1, 1]} : vector<8x8xf32> to vector<8x2xf32>
    %cst_38 = arith.constant dense<0.000000e+00> : vector<16x2xf32>
    %81 = tpu.matmul %79, %80, %cst_38 {dimension_numbers = #tpu.dot_dimension_numbers<[1], [0], [0], [1], [0, 0, 1, 1], [], []>} : vector<16x8xf32>, vector<8x2xf32>, vector<16x2xf32> -> vector<16x2xf32>
    %82 = arith.addf %77, %81 : vector<16x2xf32>
    %c3_39 = arith.constant 3 : index
    %c0_40 = arith.constant 0 : index
    %c0_41 = arith.constant 0 : index
    %83 = vector.load %arg3[%c3_39, %c0_40, %c0_41] : memref<4x16x8xf32, #tpu.memory_space<vmem>>, vector<1x16x8xf32>
    %84 = vector.shape_cast %83 : vector<1x16x8xf32> to vector<16x8xf32>
    %85 = vector.extract_strided_slice %68 {offsets = [0, 6], sizes = [8, 2], strides = [1, 1]} : vector<8x8xf32> to vector<8x2xf32>
    %cst_42 = arith.constant dense<0.000000e+00> : vector<16x2xf32>
    %86 = tpu.matmul %84, %85, %cst_42 {dimension_numbers = #tpu.dot_dimension_numbers<[1], [0], [0], [1], [0, 0, 1, 1], [], []>} : vector<16x8xf32>, vector<8x2xf32>, vector<16x2xf32> -> vector<16x2xf32>
    %87 = arith.addf %82, %86 : vector<16x2xf32>
    %88 = vector.extract_strided_slice %87 {offsets = [0, 0], sizes = [4, 2], strides = [1, 1]} : vector<16x2xf32> to vector<4x2xf32>
    %89 = vector.extract_strided_slice %87 {offsets = [4, 0], sizes = [4, 2], strides = [1, 1]} : vector<16x2xf32> to vector<4x2xf32>
    %90 = vector.extract_strided_slice %87 {offsets = [8, 0], sizes = [4, 2], strides = [1, 1]} : vector<16x2xf32> to vector<4x2xf32>
    %91 = vector.extract_strided_slice %87 {offsets = [12, 0], sizes = [4, 2], strides = [1, 1]} : vector<16x2xf32> to vector<4x2xf32>
    %92 = arith.addf %88, %89 : vector<4x2xf32>
    %93 = arith.addf %90, %91 : vector<4x2xf32>
    %94 = arith.addf %92, %93 : vector<4x2xf32>
    %95 = arith.mulf %88, %88 : vector<4x2xf32>
    %96 = arith.mulf %89, %89 : vector<4x2xf32>
    %97 = arith.addf %95, %96 : vector<4x2xf32>
    %98 = arith.mulf %90, %90 : vector<4x2xf32>
    %99 = arith.mulf %91, %91 : vector<4x2xf32>
    %100 = arith.addf %98, %99 : vector<4x2xf32>
    %101 = arith.addf %97, %100 : vector<4x2xf32>
    %cst_43 = arith.constant dense<0.000000e+00> : vector<4xf32>
    %102 = vector.multi_reduction <add>, %94, %cst_43 [1] : vector<4x2xf32> to vector<4xf32>
    %103 = vector.shape_cast %102 : vector<4xf32> to vector<4x1xf32>
    %cst_44 = arith.constant 1.250000e-01 : f32
    %104 = vector.broadcast %cst_44 : f32 to vector<4x1xf32>
    %105 = arith.mulf %103, %104 : vector<4x1xf32>
    %cst_45 = arith.constant dense<0.000000e+00> : vector<4xf32>
    %106 = vector.multi_reduction <add>, %101, %cst_45 [1] : vector<4x2xf32> to vector<4xf32>
    %107 = vector.shape_cast %106 : vector<4xf32> to vector<4x1xf32>
    %cst_46 = arith.constant 1.250000e-01 : f32
    %108 = vector.broadcast %cst_46 : f32 to vector<4x1xf32>
    %109 = arith.mulf %107, %108 : vector<4x1xf32>
    %110 = arith.mulf %105, %105 : vector<4x1xf32>
    %111 = arith.subf %109, %110 : vector<4x1xf32>
    %c0_47 = arith.constant 0 : index
    %c0_48 = arith.constant 0 : index
    %c0_49 = arith.constant 0 : index
    %112 = vector.load %arg5[%c0_47, %c0_48, %c0_49] : memref<2x4x1xf32, #tpu.memory_space<vmem>>, vector<1x4x1xf32>
    %113 = vector.shape_cast %112 : vector<1x4x1xf32> to vector<4x1xf32>
    %cst_50 = arith.constant 9.99999974E-6 : f32
    %114 = vector.broadcast %cst_50 : f32 to vector<4x1xf32>
    %115 = arith.addf %111, %114 : vector<4x1xf32>
    %116 = math.rsqrt %115 : vector<4x1xf32>
    %117 = arith.mulf %113, %116 : vector<4x1xf32>
    %c1_51 = arith.constant 1 : index
    %c0_52 = arith.constant 0 : index
    %c0_53 = arith.constant 0 : index
    %118 = vector.load %arg5[%c1_51, %c0_52, %c0_53] : memref<2x4x1xf32, #tpu.memory_space<vmem>>, vector<1x4x1xf32>
    %119 = vector.shape_cast %118 : vector<1x4x1xf32> to vector<4x1xf32>
    %120 = arith.mulf %105, %117 : vector<4x1xf32>
    %121 = arith.subf %119, %120 : vector<4x1xf32>
    %122 = vector.broadcast %117 : vector<4x1xf32> to vector<4x2xf32>
    %123 = arith.mulf %88, %122 : vector<4x2xf32>
    %124 = vector.broadcast %121 : vector<4x1xf32> to vector<4x2xf32>
    %125 = arith.addf %123, %124 : vector<4x2xf32>
    %126 = vector.broadcast %117 : vector<4x1xf32> to vector<4x2xf32>
    %127 = arith.mulf %89, %126 : vector<4x2xf32>
    %128 = vector.broadcast %121 : vector<4x1xf32> to vector<4x2xf32>
    %129 = arith.addf %127, %128 : vector<4x2xf32>
    %130 = vector.broadcast %117 : vector<4x1xf32> to vector<4x2xf32>
    %131 = arith.mulf %90, %130 : vector<4x2xf32>
    %132 = vector.broadcast %121 : vector<4x1xf32> to vector<4x2xf32>
    %133 = arith.addf %131, %132 : vector<4x2xf32>
    %134 = vector.broadcast %117 : vector<4x1xf32> to vector<4x2xf32>
    %135 = arith.mulf %91, %134 : vector<4x2xf32>
    %136 = vector.broadcast %121 : vector<4x1xf32> to vector<4x2xf32>
    %137 = arith.addf %135, %136 : vector<4x2xf32>
    %138 = arith.maximumf %125, %129 : vector<4x2xf32>
    %139 = arith.maximumf %133, %137 : vector<4x2xf32>
    %140 = arith.maximumf %138, %139 : vector<4x2xf32>
    %cst_54 = arith.constant 0.000000e+00 : f32
    %141 = vector.broadcast %cst_54 : f32 to vector<4x2xf32>
    %142 = arith.cmpf ogt, %140, %141 : vector<4x2xf32>
    %143 = vector.broadcast %1 : f32 to vector<4x2xf32>
    %144 = arith.mulf %143, %140 : vector<4x2xf32>
    %145 = arith.select %142, %140, %144 : vector<4x2xi1>, vector<4x2xf32>
    %c0_55 = arith.constant 0 : index
    %c0_56 = arith.constant 0 : index
    %146 = vector.load %arg0[%c0_55, %c0_56] : memref<4x2xf32, #tpu.memory_space<vmem>>, vector<4x2xf32>
    %147 = arith.mulf %146, %145 : vector<4x2xf32>
    %148 = arith.addf %147, %146 : vector<4x2xf32>
    %c0_57 = arith.constant 0 : index
    %c0_58 = arith.constant 0 : index
    %149 = vector.load %arg7[%c0_57, %c0_58] : memref<4x2xf32, #tpu.memory_space<vmem>>, vector<4x2xf32>
    tpu.vector_store %arg7[%c0_57, %c0_58], %148 {strides = array<i32>} : memref<4x2xf32, #tpu.memory_space<vmem>>, vector<4x2xf32>,
    return
  }
}

</mosaic_0001>

<llo_original>
// kernel: tpu_custom_call.1
$region0: #{tpu_custom_call.1}
  #allocation0 [shape = 'u32[]', space=smem, size = 0x4, offset = 0x4, fixed_abs, tag = 'smem constant byte address 0x4 - core index']
  #allocation1 [shape = 'u32[144,128]{1,0:T(1,128)}', space=vmem, size = 0x12000, scoped, tag = 'internal scratch']
  %s0 = inlined_call_operand.vmem [shape: f32[4,2], index: 0, kind: input, shape index: {}]
  %s1 = inlined_call_operand.vmem [shape: f32[4,36,8], index: 1, kind: input, shape index: {}]
  %s2 = inlined_call_operand.vmem [shape: f32[8,36], index: 2, kind: input, shape index: {}]
  %s3 = inlined_call_operand.vmem [shape: f32[4,16,8], index: 3, kind: input, shape index: {}]
  %s4 = inlined_call_operand.vmem [shape: f32[2,8,1], index: 4, kind: input, shape index: {}]
  %s5 = inlined_call_operand.vmem [shape: f32[2,4,1], index: 5, kind: input, shape index: {}]
  %s6 = inlined_call_operand.vmem [shape: f32[2], index: 6, kind: input, shape index: {}]
  %s7 = inlined_call_operand.vmem [shape: f32[4,2], index: 7, kind: output, shape index: {}]
  %s8 = sld [smem:[#allocation0]]
  $region42: #{tpu_custom_call.1} parent=0
    _
  %s10 = ssub.s32 1, %s8
  %s11 = scalar_select 0, %s10, %s8
  $region1: #{tpu_custom_call.1} parent=0
    #allocation2 [shape = 'u8[512]{0}', space=smem, size = 0x200, scoped, tag = 'input window, operand 6, single buffered']
    #allocation3 [shape = 's32[1]{0}', space=sflag, size = 0x4, scoped, tag = 'scoped memory for tpu_custom_call.1']
    %12 = vsyncpa [#allocation3], 0
    // Predicated region
    $region2: #{tpu_custom_call.1} parent=1 // pred_check
      _
    $region3: #{tpu_custom_call.1} parent=1 // pred_check_branch
      %14 = sbr.rel (0) target = $region5
    $region4: #{tpu_custom_call.1} parent=1 // pred_region
      _
    $region5: #{tpu_custom_call.1} parent=1 // pred_fallthru
      _
    // Predicated region
    $region6: #{tpu_custom_call.1} parent=1 // pred_check
      _
    $region7: #{tpu_custom_call.1} parent=1 // pred_check_branch
      %16 = sbr.rel (0) target = $region9
    $region8: #{tpu_custom_call.1} parent=1 // pred_region
      _
    $region9: #{tpu_custom_call.1} parent=1 // pred_fallthru
      _
    // Predicated region
    $region10: #{tpu_custom_call.1} parent=1 // pred_check
      _
    $region11: #{tpu_custom_call.1} parent=1 // pred_check_branch
      %18 = sbr.rel (0) target = $region13
    $region12: #{tpu_custom_call.1} parent=1 // pred_region
      _
    $region13: #{tpu_custom_call.1} parent=1 // pred_fallthru
      _
    // Predicated region
    $region14: #{tpu_custom_call.1} parent=1 // pred_check
      _
    $region15: #{tpu_custom_call.1} parent=1 // pred_check_branch
      %20 = sbr.rel (0) target = $region17
    $region16: #{tpu_custom_call.1} parent=1 // pred_region
      _
    $region17: #{tpu_custom_call.1} parent=1 // pred_fallthru
      _
    // Predicated region
    $region18: #{tpu_custom_call.1} parent=1 // pred_check
      _
    $region19: #{tpu_custom_call.1} parent=1 // pred_check_branch
      %22 = sbr.rel (0) target = $region21
    $region20: #{tpu_custom_call.1} parent=1 // pred_region
      _
    $region21: #{tpu_custom_call.1} parent=1 // pred_fallthru
      _
    // Predicated region
    $region22: #{tpu_custom_call.1} parent=1 // pred_check
      _
    $region23: #{tpu_custom_call.1} parent=1 // pred_check_branch
      %24 = sbr.rel (0) target = $region25
    $region24: #{tpu_custom_call.1} parent=1 // pred_region
      _
    $region25: #{tpu_custom_call.1} parent=1 // pred_fallthru
      _
    // Predicated region
    $region26: #{tpu_custom_call.1} parent=1 // pred_check
      _
    $region27: #{tpu_custom_call.1} parent=1 // pred_check_branch
      %26 = sbr.rel (0) target = $region29
    $region28: #{tpu_custom_call.1} parent=1 // pred_region
      %s28 = ssub.s32 16, 16
      %29 = vsyncadd [#allocation3], %s28
      %s31 = sshll.u32 %s6, 4
      %s32 = int_to_ptr.vmem [resolvable:$true] %s31
      %34 = dma.vmem_to_smem %s32, 16, [#allocation2], [#allocation3]
    $region29: #{tpu_custom_call.1} parent=1 // pred_fallthru
      _
    // Predicated region
    $region30: #{tpu_custom_call.1} parent=1 // pred_check
      _
    $region31: #{tpu_custom_call.1} parent=1 // pred_check_branch
      %36 = sbr.rel (0) target = $region33
    $region32: #{tpu_custom_call.1} parent=1 // pred_region
      %37 = dma.done [#allocation3], 16
    $region33: #{tpu_custom_call.1} parent=1 // pred_fallthru
      _
    %38 = sfence
    %s39 = sld [smem:[#allocation2]]
    %s40 = sld [smem:[#allocation2 + $0x1]]
    %v41 = vld [vmem:[%s2] sm:$0xff]
    %v42 = vld [vmem:[%s1] sm:$0xff]
    %v43 = vld [vmem:[%s1 + $0x8] sm:$0xff]
    %v44 = vld [vmem:[%s1 + $0x10] sm:$0xff]
    %v45 = vld [vmem:[%s1 + $0x18] sm:$0xff]
    %v46 = vld [vmem:[%s1 + $0x20] sm:$0xf]
    %vm47 = vcmask 293888
    %v49 = vsel %vm47, %v41, 0
    %vm51 = vcmask 1043456
    %v53 = vsel %vm51, %v46, 0
    %55 = vmatprep.subr.mxu0 0.0
    %56 = vmatpush1.msra.mxu0 %v42
    %57 = vmatprep.subr.mxu0 0.0
    %58 = vmatpush1.msra.mxu0 %v43
    %59 = vmatprep.subr.mxu0 0.0
    %60 = vmatpush1.msra.mxu0 %v44
    %61 = vmatprep.subr.mxu0 0.0
    %62 = vmatpush1.msra.mxu0 %v45
    %63 = vmatprep.subr.mxu0 0.0
    %64 = vmatpush1.msra.mxu0 %v53
    %65 = vmatprep.subr.mxu0 0.0
    %66 = vmatpush1.msra.mxu0 0.0
    %67 = vmatprep.subr.mxu0 0.0
    %68 = vmatpush1.msra.mxu0 0.0
    %69 = vmatprep.subr.mxu0 0.0
    %70 = vmatpush1.msra.mxu0 0.0
    %71 = vmatprep.subr.mxu0 0.0
    %72 = vmatpush1.msra.mxu0 0.0
    %73 = vmatprep.subr.mxu0 0.0
    %74 = vmatpush1.msra.mxu0 0.0
    %75 = vmatprep.subr.mxu0 0.0
    %76 = vmatpush1.msra.mxu0 0.0
    %77 = vmatprep.subr.mxu0 0.0
    %78 = vmatpush1.msra.mxu0 0.0
    %79 = vmatprep.subr.mxu0 0.0
    %80 = vmatpush1.msra.mxu0 0.0
    %81 = vmatprep.subr.mxu0 0.0
    %82 = vmatpush1.msra.mxu0 0.0
    %83 = vmatprep.subr.mxu0 0.0
    %84 = vmatpush1.msra.mxu0 0.0
    %85 = vmatprep.subr.mxu0 0.0
    %86 = vmatpush1.msra.mxu0 0.0
    %87 = vmatprep.subr.mxu0 0.0
    %88 = vmatpush1.msra.mxu0 0.0
    %89 = vmatprep.subr.mxu0 0.0
    %90 = vmatpush1.msra.mxu0 0.0
    %91 = vmatprep.subr.mxu0 0.0
    %92 = vmatpush1.msra.mxu0 0.0
    %93 = vmatprep.subr.mxu0 0.0
    %94 = vmatpush1.msra.mxu0 0.0
    %95 = vmatprep.subr.mxu0 0.0
    %96 = vmatpush1.msra.mxu0 0.0
    %97 = vmatprep.subr.mxu0 0.0
    %98 = vmatpush1.msra.mxu0 0.0
    %99 = vmatprep.subr.mxu0 0.0
    %100 = vmatpush1.msra.mxu0 0.0
    %101 = vmatprep.subr.mxu0 0.0
    %102 = vmatpush1.msra.mxu0 0.0
    %103 = vmatprep.subr.mxu0 0.0
    %104 = vmatpush1.msra.mxu0 0.0
    %105 = vmatprep.subr.mxu0 0.0
    %106 = vmatpush1.msra.mxu0 0.0
    %107 = vmatprep.subr.mxu0 0.0
    %108 = vmatpush1.msra.mxu0 0.0
    %109 = vmatprep.subr.mxu0 0.0
    %110 = vmatpush1.msra.mxu0 0.0
    %111 = vmatprep.subr.mxu0 0.0
    %112 = vmatpush1.msra.mxu0 0.0
    %113 = vmatprep.subr.mxu0 0.0
    %114 = vmatpush1.msra.mxu0 0.0
    %115 = vmatprep.subr.mxu0 0.0
    %116 = vmatpush1.msra.mxu0 0.0
    %117 = vmatprep.subr.mxu0 0.0
    %118 = vmatpush1.msra.mxu0 0.0
    %119 = vmatprep.mubr.f32.mxu0 0.0
    %120 = vmatmul.mubr.f32.gmra.mrb[0].mxu0 %v49
    %v121 = vpop.f32.mrb[0].mxu0
    %v122 = vadd.f32 0.0, %v121
    %v123 = vpop.f32.mrb[0].mxu0
    %124 = vdwg.mxu0
    %s125 = scalar_lea.vmem %s1, 40
    %v126 = vld [vmem:[%s125] sm:$0xff]
    %v127 = vld [vmem:[%s125 + $0x8] sm:$0xff]
    %v128 = vld [vmem:[%s125 + $0x10] sm:$0xff]
    %v129 = vld [vmem:[%s125 + $0x18] sm:$0xff]
    %v130 = vld [vmem:[%s125 + $0x20] sm:$0xf]
    %v132 = vsel %vm51, %v130, 0
    %134 = vmatprep.subr.mxu0 0.0
    %135 = vmatpush1.msra.mxu0 %v126
    %136 = vmatprep.subr.mxu0 0.0
    %137 = vmatpush1.msra.mxu0 %v127
    %138 = vmatprep.subr.mxu0 0.0
    %139 = vmatpush1.msra.mxu0 %v128
    %140 = vmatprep.subr.mxu0 0.0
    %141 = vmatpush1.msra.mxu0 %v129
    %142 = vmatprep.subr.mxu0 0.0
    %143 = vmatpush1.msra.mxu0 %v132
    %144 = vmatprep.subr.mxu0 0.0
    %145 = vmatpush1.msra.mxu0 0.0
    %146 = vmatprep.subr.mxu0 0.0
    %147 = vmatpush1.msra.mxu0 0.0
    %148 = vmatprep.subr.mxu0 0.0
    %149 = vmatpush1.msra.mxu0 0.0
    %150 = vmatprep.subr.mxu0 0.0
    %151 = vmatpush1.msra.mxu0 0.0
    %152 = vmatprep.subr.mxu0 0.0
    %153 = vmatpush1.msra.mxu0 0.0
    %154 = vmatprep.subr.mxu0 0.0
    %155 = vmatpush1.msra.mxu0 0.0
    %156 = vmatprep.subr.mxu0 0.0
    %157 = vmatpush1.msra.mxu0 0.0
    %158 = vmatprep.subr.mxu0 0.0
    %159 = vmatpush1.msra.mxu0 0.0
    %160 = vmatprep.subr.mxu0 0.0
    %161 = vmatpush1.msra.mxu0 0.0
    %162 = vmatprep.subr.mxu0 0.0
    %163 = vmatpush1.msra.mxu0 0.0
    %164 = vmatprep.subr.mxu0 0.0
    %165 = vmatpush1.msra.mxu0 0.0
    %166 = vmatprep.subr.mxu0 0.0
    %167 = vmatpush1.msra.mxu0 0.0
    %168 = vmatprep.subr.mxu0 0.0
    %169 = vmatpush1.msra.mxu0 0.0
    %170 = vmatprep.subr.mxu0 0.0
    %171 = vmatpush1.msra.mxu0 0.0
    %172 = vmatprep.subr.mxu0 0.0
    %173 = vmatpush1.msra.mxu0 0.0
    %174 = vmatprep.subr.mxu0 0.0
    %175 = vmatpush1.msra.mxu0 0.0
    %176 = vmatprep.subr.mxu0 0.0
    %177 = vmatpush1.msra.mxu0 0.0
    %178 = vmatprep.subr.mxu0 0.0
    %179 = vmatpush1.msra.mxu0 0.0
    %180 = vmatprep.subr.mxu0 0.0
    %181 = vmatpush1.msra.mxu0 0.0
    %182 = vmatprep.subr.mxu0 0.0
    %183 = vmatpush1.msra.mxu0 0.0
    %184 = vmatprep.subr.mxu0 0.0
    %185 = vmatpush1.msra.mxu0 0.0
    %186 = vmatprep.subr.mxu0 0.0
    %187 = vmatpush1.msra.mxu0 0.0
    %188 = vmatprep.subr.mxu0 0.0
    %189 = vmatpush1.msra.mxu0 0.0
    %190 = vmatprep.subr.mxu0 0.0
    %191 = vmatpush1.msra.mxu0 0.0
    %192 = vmatprep.subr.mxu0 0.0
    %193 = vmatpush1.msra.mxu0 0.0
    %194 = vmatprep.subr.mxu0 0.0
    %195 = vmatpush1.msra.mxu0 0.0
    %196 = vmatprep.subr.mxu0 0.0
    %197 = vmatpush1.msra.mxu0 0.0
    %198 = vmatprep.mubr.f32.mxu0 0.0
    %199 = vmatmul.mubr.f32.gmra.mrb[0].mxu0 %v49
    %v200 = vpop.f32.mrb[0].mxu0
    %v201 = vadd.f32 0.0, %v200
    %v202 = vpop.f32.mrb[0].mxu0
    %203 = vdwg.mxu0
    %s204 = scalar_lea.vmem %s1, 80
    %v205 = vld [vmem:[%s204] sm:$0xff]
    %v206 = vld [vmem:[%s204 + $0x8] sm:$0xff]
    %v207 = vld [vmem:[%s204 + $0x10] sm:$0xff]
    %v208 = vld [vmem:[%s204 + $0x18] sm:$0xff]
    %v209 = vld [vmem:[%s204 + $0x20] sm:$0xf]
    %v211 = vsel %vm51, %v209, 0
    %213 = vmatprep.subr.mxu0 0.0
    %214 = vmatpush1.msra.mxu0 %v205
    %215 = vmatprep.subr.mxu0 0.0
    %216 = vmatpush1.msra.mxu0 %v206
    %217 = vmatprep.subr.mxu0 0.0
    %218 = vmatpush1.msra.mxu0 %v207
    %219 = vmatprep.subr.mxu0 0.0
    %220 = vmatpush1.msra.mxu0 %v208
    %221 = vmatprep.subr.mxu0 0.0
    %222 = vmatpush1.msra.mxu0 %v211
    %223 = vmatprep.subr.mxu0 0.0
    %224 = vmatpush1.msra.mxu0 0.0
    %225 = vmatprep.subr.mxu0 0.0
    %226 = vmatpush1.msra.mxu0 0.0
    %227 = vmatprep.subr.mxu0 0.0
    %228 = vmatpush1.msra.mxu0 0.0
    %229 = vmatprep.subr.mxu0 0.0
    %230 = vmatpush1.msra.mxu0 0.0
    %231 = vmatprep.subr.mxu0 0.0
    %232 = vmatpush1.msra.mxu0 0.0
    %233 = vmatprep.subr.mxu0 0.0
    %234 = vmatpush1.msra.mxu0 0.0
    %235 = vmatprep.subr.mxu0 0.0
    %236 = vmatpush1.msra.mxu0 0.0
    %237 = vmatprep.subr.mxu0 0.0
    %238 = vmatpush1.msra.mxu0 0.0
    %239 = vmatprep.subr.mxu0 0.0
    %240 = vmatpush1.msra.mxu0 0.0
    %241 = vmatprep.subr.mxu0 0.0
    %242 = vmatpush1.msra.mxu0 0.0
    %243 = vmatprep.subr.mxu0 0.0
    %244 = vmatpush1.msra.mxu0 0.0
    %245 = vmatprep.subr.mxu0 0.0
    %246 = vmatpush1.msra.mxu0 0.0
    %247 = vmatprep.subr.mxu0 0.0
    %248 = vmatpush1.msra.mxu0 0.0
    %249 = vmatprep.subr.mxu0 0.0
    %250 = vmatpush1.msra.mxu0 0.0
    %251 = vmatprep.subr.mxu0 0.0
    %252 = vmatpush1.msra.mxu0 0.0
    %253 = vmatprep.subr.mxu0 0.0
    %254 = vmatpush1.msra.mxu0 0.0
    %255 = vmatprep.subr.mxu0 0.0
    %256 = vmatpush1.msra.mxu0 0.0
    %257 = vmatprep.subr.mxu0 0.0
    %258 = vmatpush1.msra.mxu0 0.0
    %259 = vmatprep.subr.mxu0 0.0
    %260 = vmatpush1.msra.mxu0 0.0
    %261 = vmatprep.subr.mxu0 0.0
    %262 = vmatpush1.msra.mxu0 0.0
    %263 = vmatprep.subr.mxu0 0.0
    %264 = vmatpush1.msra.mxu0 0.0
    %265 = vmatprep.subr.mxu0 0.0
    %266 = vmatpush1.msra.mxu0 0.0
    %267 = vmatprep.subr.mxu0 0.0
    %268 = vmatpush1.msra.mxu0 0.0
    %269 = vmatprep.subr.mxu0 0.0
    %270 = vmatpush1.msra.mxu0 0.0
    %271 = vmatprep.subr.mxu0 0.0
    %272 = vmatpush1.msra.mxu0 0.0
    %273 = vmatprep.subr.mxu0 0.0
    %274 = vmatpush1.msra.mxu0 0.0
    %275 = vmatprep.subr.mxu0 0.0
    %276 = vmatpush1.msra.mxu0 0.0
    %277 = vmatprep.mubr.f32.mxu0 0.0
    %278 = vmatmul.mubr.f32.gmra.mrb[0].mxu0 %v49
    %v279 = vpop.f32.mrb[0].mxu0
    %v280 = vadd.f32 0.0, %v279
    %v281 = vpop.f32.mrb[0].mxu0
    %282 = vdwg.mxu0
    %s283 = scalar_lea.vmem %s1, 120
    %v284 = vld [vmem:[%s283] sm:$0xff]
    %v285 = vld [vmem:[%s283 + $0x8] sm:$0xff]
    %v286 = vld [vmem:[%s283 + $0x10] sm:$0xff]
    %v287 = vld [vmem:[%s283 + $0x18] sm:$0xff]
    %v288 = vld [vmem:[%s283 + $0x20] sm:$0xf]
    %v290 = vsel %vm51, %v288, 0
    %292 = vmatprep.subr.mxu0 0.0
    %293 = vmatpush1.msra.mxu0 %v284
    %294 = vmatprep.subr.mxu0 0.0
    %295 = vmatpush1.msra.mxu0 %v285
    %296 = vmatprep.subr.mxu0 0.0
    %297 = vmatpush1.msra.mxu0 %v286
    %298 = vmatprep.subr.mxu0 0.0
    %299 = vmatpush1.msra.mxu0 %v287
    %300 = vmatprep.subr.mxu0 0.0
    %301 = vmatpush1.msra.mxu0 %v290
    %302 = vmatprep.subr.mxu0 0.0
    %303 = vmatpush1.msra.mxu0 0.0
    %304 = vmatprep.subr.mxu0 0.0
    %305 = vmatpush1.msra.mxu0 0.0
    %306 = vmatprep.subr.mxu0 0.0
    %307 = vmatpush1.msra.mxu0 0.0
    %308 = vmatprep.subr.mxu0 0.0
    %309 = vmatpush1.msra.mxu0 0.0
    %310 = vmatprep.subr.mxu0 0.0
    %311 = vmatpush1.msra.mxu0 0.0
    %312 = vmatprep.subr.mxu0 0.0
    %313 = vmatpush1.msra.mxu0 0.0
    %314 = vmatprep.subr.mxu0 0.0
    %315 = vmatpush1.msra.mxu0 0.0
    %316 = vmatprep.subr.mxu0 0.0
    %317 = vmatpush1.msra.mxu0 0.0
    %318 = vmatprep.subr.mxu0 0.0
    %319 = vmatpush1.msra.mxu0 0.0
    %320 = vmatprep.subr.mxu0 0.0
    %321 = vmatpush1.msra.mxu0 0.0
    %322 = vmatprep.subr.mxu0 0.0
    %323 = vmatpush1.msra.mxu0 0.0
    %324 = vmatprep.subr.mxu0 0.0
    %325 = vmatpush1.msra.mxu0 0.0
    %326 = vmatprep.subr.mxu0 0.0
    %327 = vmatpush1.msra.mxu0 0.0
    %328 = vmatprep.subr.mxu0 0.0
    %329 = vmatpush1.msra.mxu0 0.0
    %330 = vmatprep.subr.mxu0 0.0
    %331 = vmatpush1.msra.mxu0 0.0
    %332 = vmatprep.subr.mxu0 0.0
    %333 = vmatpush1.msra.mxu0 0.0
    %334 = vmatprep.subr.mxu0 0.0
    %335 = vmatpush1.msra.mxu0 0.0
    %336 = vmatprep.subr.mxu0 0.0
    %337 = vmatpush1.msra.mxu0 0.0
    %338 = vmatprep.subr.mxu0 0.0
    %339 = vmatpush1.msra.mxu0 0.0
    %340 = vmatprep.subr.mxu0 0.0
    %341 = vmatpush1.msra.mxu0 0.0
    %342 = vmatprep.subr.mxu0 0.0
    %343 = vmatpush1.msra.mxu0 0.0
    %344 = vmatprep.subr.mxu0 0.0
    %345 = vmatpush1.msra.mxu0 0.0
    %346 = vmatprep.subr.mxu0 0.0
    %347 = vmatpush1.msra.mxu0 0.0
    %348 = vmatprep.subr.mxu0 0.0
    %349 = vmatpush1.msra.mxu0 0.0
    %350 = vmatprep.subr.mxu0 0.0
    %351 = vmatpush1.msra.mxu0 0.0
    %352 = vmatprep.subr.mxu0 0.0
    %353 = vmatpush1.msra.mxu0 0.0
    %354 = vmatprep.subr.mxu0 0.0
    %355 = vmatpush1.msra.mxu0 0.0
    %356 = vmatprep.mubr.f32.mxu0 0.0
    %357 = vmatmul.mubr.f32.gmra.mrb[0].mxu0 %v49
    %v358 = vpop.f32.mrb[0].mxu0
    %v359 = vadd.f32 0.0, %v358
    %v360 = vpop.f32.mrb[0].mxu0
    %361 = vdwg.mxu0
    %v362 = vadd.f32 %v122, %v201
    %v363 = vadd.f32 %v280, %v359
    %v364 = vadd.f32 %v362, %v363
    %v365 = vmul.f32 %v122, %v122
    %v366 = vmul.f32 %v201, %v201
    %v367 = vadd.f32 %v365, %v366
    %v368 = vmul.f32 %v280, %v280
    %v369 = vmul.f32 %v359, %v359
    %v370 = vadd.f32 %v368, %v369
    %v371 = vadd.f32 %v367, %v370
    %vm372 = vcmask 64512
    %v373 = vsel %vm372, %v364, 0.0
    %374 = vadd.xlane.f32.xlu0 %v373
    %v375 = vpop.xlane.xlu0 %374
    %v376 = vmul.f32 %v375, 0.03125
    %v377 = vsel %vm372, %v371, 0.0
    %378 = vadd.xlane.f32.xlu0 %v377
    %v379 = vpop.xlane.xlu0 %378
    %v380 = vmul.f32 %v379, 0.03125
    %v381 = vmul.f32 %v376, %v376
    %v382 = vsub.f32 %v380, %v381
    %v383 = vld [vmem:[%s4] sm:$0xff]
    %v384 = vadd.f32 %v382, 1e-05
    %v385 = vrsqrt.pop %v384
    %v386 = vmul.f32 %v383, %v385
    %s387 = scalar_lea.vmem %s4, 8
    %v388 = vld [vmem:[%s387] sm:$0xff]
    %v389 = vmul.f32 %v376, %v386
    %v390 = vsub.f32 %v388, %v389
    %392 = vset.pattern.permute.xlu0 0
    %393 = vperm.xlu0 %392, %v386
    %v394 = vpop.permute.xlu0 %393
    %v396 = vmul.f32 %v122, %v394
    %398 = vset.pattern.permute.xlu0 0
    %399 = vperm.xlu0 %398, %v390
    %v400 = vpop.permute.xlu0 %399
    %v402 = vadd.f32 %v396, %v400
    %v403 = vmul.f32 %v201, %v394
    %v404 = vadd.f32 %v403, %v400
    %v405 = vmul.f32 %v280, %v394
    %v406 = vadd.f32 %v405, %v400
    %v407 = vmul.f32 %v359, %v394
    %v408 = vadd.f32 %v407, %v400
    %v409 = vmax.f32 %v402, %v404
    %v410 = vmax.f32 %v406, %v408
    %v411 = vmax.f32 %v409, %v410
    %vm412 = vcmp.gt.f32.partialorder %v411, 0.0
    %v413 = vstv %s39
    %v414 = vmul.f32 %v413, %v411
    %v415 = vsel %vm412, %v411, %v414
    %v416 = vld [vmem:[%s3] sm:$0xff]
    %v417 = vld [vmem:[%s3 + $0x8] sm:$0xff]
    %s418 = scalar_lea.vmem %s3, 16
    %v419 = vld [vmem:[%s418] sm:$0xff]
    %v420 = vld [vmem:[%s418 + $0x8] sm:$0xff]
    %422 = vrot.lane.b32.xlu0 %v415, 126
    %v423 = vpop.permute.xlu0 %422
    %v426 = vsel %vm372, %v419, 0
    %v429 = vsel %vm372, %v420, 0
    %431 = vmatprep.subr.mxu0 0.0
    %432 = vmatpush1.msra.mxu0 %v423
    %433 = vmatprep.subr.mxu0 0.0
    %434 = vmatpush1.msra.mxu0 0.0
    %435 = vmatprep.subr.mxu0 0.0
    %436 = vmatpush1.msra.mxu0 0.0
    %437 = vmatprep.subr.mxu0 0.0
    %438 = vmatpush1.msra.mxu0 0.0
    %439 = vmatprep.subr.mxu0 0.0
    %440 = vmatpush1.msra.mxu0 0.0
    %441 = vmatprep.subr.mxu0 0.0
    %442 = vmatpush1.msra.mxu0 0.0
    %443 = vmatprep.subr.mxu0 0.0
    %444 = vmatpush1.msra.mxu0 0.0
    %445 = vmatprep.subr.mxu0 0.0
    %446 = vmatpush1.msra.mxu0 0.0
    %447 = vmatprep.subr.mxu0 0.0
    %448 = vmatpush1.msra.mxu0 0.0
    %449 = vmatprep.subr.mxu0 0.0
    %450 = vmatpush1.msra.mxu0 0.0
    %451 = vmatprep.subr.mxu0 0.0
    %452 = vmatpush1.msra.mxu0 0.0
    %453 = vmatprep.subr.mxu0 0.0
    %454 = vmatpush1.msra.mxu0 0.0
    %455 = vmatprep.subr.mxu0 0.0
    %456 = vmatpush1.msra.mxu0 0.0
    %457 = vmatprep.subr.mxu0 0.0
    %458 = vmatpush1.msra.mxu0 0.0
    %459 = vmatprep.subr.mxu0 0.0
    %460 = vmatpush1.msra.mxu0 0.0
    %461 = vmatprep.subr.mxu0 0.0
    %462 = vmatpush1.msra.mxu0 0.0
    %463 = vmatprep.subr.mxu0 0.0
    %464 = vmatpush1.msra.mxu0 0.0
    %465 = vmatprep.subr.mxu0 0.0
    %466 = vmatpush1.msra.mxu0 0.0
    %467 = vmatprep.subr.mxu0 0.0
    %468 = vmatpush1.msra.mxu0 0.0
    %469 = vmatprep.subr.mxu0 0.0
    %470 = vmatpush1.msra.mxu0 0.0
    %471 = vmatprep.subr.mxu0 0.0
    %472 = vmatpush1.msra.mxu0 0.0
    %473 = vmatprep.subr.mxu0 0.0
    %474 = vmatpush1.msra.mxu0 0.0
    %475 = vmatprep.subr.mxu0 0.0
    %476 = vmatpush1.msra.mxu0 0.0
    %477 = vmatprep.subr.mxu0 0.0
    %478 = vmatpush1.msra.mxu0 0.0
    %479 = vmatprep.subr.mxu0 0.0
    %480 = vmatpush1.msra.mxu0 0.0
    %481 = vmatprep.subr.mxu0 0.0
    %482 = vmatpush1.msra.mxu0 0.0
    %483 = vmatprep.subr.mxu0 0.0
    %484 = vmatpush1.msra.mxu0 0.0
    %485 = vmatprep.subr.mxu0 0.0
    %486 = vmatpush1.msra.mxu0 0.0
    %487 = vmatprep.subr.mxu0 0.0
    %488 = vmatpush1.msra.mxu0 0.0
    %489 = vmatprep.subr.mxu0 0.0
    %490 = vmatpush1.msra.mxu0 0.0
    %491 = vmatprep.subr.mxu0 0.0
    %492 = vmatpush1.msra.mxu0 0.0
    %493 = vmatprep.subr.mxu0 0.0
    %494 = vmatpush1.msra.mxu0 0.0
    %495 = vmatprep.mubr.f32.mxu0 0.0
    %496 = vmatmul.mubr.f32.gmra.mrb[0].mxu0 %v426
    %v497 = vpop.f32.mrb[0].mxu0
    %v498 = vadd.f32 0.0, %v497
    %v499 = vpop.f32.mrb[0].mxu0
    %500 = vmatprep.mubr.f32.mxu0 0.0
    %501 = vmatmul.mubr.f32.gmra.mrb[0].mxu0 %v429
    %v502 = vpop.f32.mrb[0].mxu0
    %v503 = vadd.f32 0.0, %v502
    %v504 = vpop.f32.mrb[0].mxu0
    %505 = vdwg.mxu0
    %v507 = vsel %vm372, %v416, 0
    %v510 = vsel %vm372, %v417, 0
    %512 = vmatprep.subr.mxu0 0.0
    %513 = vmatpush1.msra.mxu0 %v415
    %514 = vmatprep.subr.mxu0 0.0
    %515 = vmatpush1.msra.mxu0 0.0
    %516 = vmatprep.subr.mxu0 0.0
    %517 = vmatpush1.msra.mxu0 0.0
    %518 = vmatprep.subr.mxu0 0.0
    %519 = vmatpush1.msra.mxu0 0.0
    %520 = vmatprep.subr.mxu0 0.0
    %521 = vmatpush1.msra.mxu0 0.0
    %522 = vmatprep.subr.mxu0 0.0
    %523 = vmatpush1.msra.mxu0 0.0
    %524 = vmatprep.subr.mxu0 0.0
    %525 = vmatpush1.msra.mxu0 0.0
    %526 = vmatprep.subr.mxu0 0.0
    %527 = vmatpush1.msra.mxu0 0.0
    %528 = vmatprep.subr.mxu0 0.0
    %529 = vmatpush1.msra.mxu0 0.0
    %530 = vmatprep.subr.mxu0 0.0
    %531 = vmatpush1.msra.mxu0 0.0
    %532 = vmatprep.subr.mxu0 0.0
    %533 = vmatpush1.msra.mxu0 0.0
    %534 = vmatprep.subr.mxu0 0.0
    %535 = vmatpush1.msra.mxu0 0.0
    %536 = vmatprep.subr.mxu0 0.0
    %537 = vmatpush1.msra.mxu0 0.0
    %538 = vmatprep.subr.mxu0 0.0
    %539 = vmatpush1.msra.mxu0 0.0
    %540 = vmatprep.subr.mxu0 0.0
    %541 = vmatpush1.msra.mxu0 0.0
    %542 = vmatprep.subr.mxu0 0.0
    %543 = vmatpush1.msra.mxu0 0.0
    %544 = vmatprep.subr.mxu0 0.0
    %545 = vmatpush1.msra.mxu0 0.0
    %546 = vmatprep.subr.mxu0 0.0
    %547 = vmatpush1.msra.mxu0 0.0
    %548 = vmatprep.subr.mxu0 0.0
    %549 = vmatpush1.msra.mxu0 0.0
    %550 = vmatprep.subr.mxu0 0.0
    %551 = vmatpush1.msra.mxu0 0.0
    %552 = vmatprep.subr.mxu0 0.0
    %553 = vmatpush1.msra.mxu0 0.0
    %554 = vmatprep.subr.mxu0 0.0
    %555 = vmatpush1.msra.mxu0 0.0
    %556 = vmatprep.subr.mxu0 0.0
    %557 = vmatpush1.msra.mxu0 0.0
    %558 = vmatprep.subr.mxu0 0.0
    %559 = vmatpush1.msra.mxu0 0.0
    %560 = vmatprep.subr.mxu0 0.0
    %561 = vmatpush1.msra.mxu0 0.0
    %562 = vmatprep.subr.mxu0 0.0
    %563 = vmatpush1.msra.mxu0 0.0
    %564 = vmatprep.subr.mxu0 0.0
    %565 = vmatpush1.msra.mxu0 0.0
    %566 = vmatprep.subr.mxu0 0.0
    %567 = vmatpush1.msra.mxu0 0.0
    %568 = vmatprep.subr.mxu0 0.0
    %569 = vmatpush1.msra.mxu0 0.0
    %570 = vmatprep.subr.mxu0 0.0
    %571 = vmatpush1.msra.mxu0 0.0
    %572 = vmatprep.subr.mxu0 0.0
    %573 = vmatpush1.msra.mxu0 0.0
    %574 = vmatprep.subr.mxu0 0.0
    %575 = vmatpush1.msra.mxu0 0.0
    %576 = vmatprep.mubr.f32.mxu0 0.0
    %577 = vmatmul.mubr.f32.gmra.mrb[0].mxu0 %v507
    %v578 = vpop.f32.mrb[0].mxu0
    %v579 = vadd.f32 %v498, %v578
    %v580 = vpop.f32.mrb[0].mxu0
    %581 = vmatprep.mubr.f32.mxu0 0.0
    %582 = vmatmul.mubr.f32.gmra.mrb[0].mxu0 %v510
    %v583 = vpop.f32.mrb[0].mxu0
    %v584 = vadd.f32 %v503, %v583
    %v585 = vpop.f32.mrb[0].mxu0
    %586 = vdwg.mxu0
    %s587 = scalar_lea.vmem %s3, 32
    %v588 = vld [vmem:[%s587] sm:$0xff]
    %v589 = vld [vmem:[%s587 + $0x8] sm:$0xff]
    %590 = vrot.lane.b32.xlu0 %v415, 124
    %v591 = vpop.permute.xlu0 %590
    %v594 = vsel %vm372, %v588, 0
    %v597 = vsel %vm372, %v589, 0
    %599 = vmatprep.subr.mxu0 0.0
    %600 = vmatpush1.msra.mxu0 %v591
    %601 = vmatprep.subr.mxu0 0.0
    %602 = vmatpush1.msra.mxu0 0.0
    %603 = vmatprep.subr.mxu0 0.0
    %604 = vmatpush1.msra.mxu0 0.0
    %605 = vmatprep.subr.mxu0 0.0
    %606 = vmatpush1.msra.mxu0 0.0
    %607 = vmatprep.subr.mxu0 0.0
    %608 = vmatpush1.msra.mxu0 0.0
    %609 = vmatprep.subr.mxu0 0.0
    %610 = vmatpush1.msra.mxu0 0.0
    %611 = vmatprep.subr.mxu0 0.0
    %612 = vmatpush1.msra.mxu0 0.0
    %613 = vmatprep.subr.mxu0 0.0
    %614 = vmatpush1.msra.mxu0 0.0
    %615 = vmatprep.subr.mxu0 0.0
    %616 = vmatpush1.msra.mxu0 0.0
    %617 = vmatprep.subr.mxu0 0.0
    %618 = vmatpush1.msra.mxu0 0.0
    %619 = vmatprep.subr.mxu0 0.0
    %620 = vmatpush1.msra.mxu0 0.0
    %621 = vmatprep.subr.mxu0 0.0
    %622 = vmatpush1.msra.mxu0 0.0
    %623 = vmatprep.subr.mxu0 0.0
    %624 = vmatpush1.msra.mxu0 0.0
    %625 = vmatprep.subr.mxu0 0.0
    %626 = vmatpush1.msra.mxu0 0.0
    %627 = vmatprep.subr.mxu0 0.0
    %628 = vmatpush1.msra.mxu0 0.0
    %629 = vmatprep.subr.mxu0 0.0
    %630 = vmatpush1.msra.mxu0 0.0
    %631 = vmatprep.subr.mxu0 0.0
    %632 = vmatpush1.msra.mxu0 0.0
    %633 = vmatprep.subr.mxu0 0.0
    %634 = vmatpush1.msra.mxu0 0.0
    %635 = vmatprep.subr.mxu0 0.0
    %636 = vmatpush1.msra.mxu0 0.0
    %637 = vmatprep.subr.mxu0 0.0
    %638 = vmatpush1.msra.mxu0 0.0
    %639 = vmatprep.subr.mxu0 0.0
    %640 = vmatpush1.msra.mxu0 0.0
    %641 = vmatprep.subr.mxu0 0.0
    %642 = vmatpush1.msra.mxu0 0.0
    %643 = vmatprep.subr.mxu0 0.0
    %644 = vmatpush1.msra.mxu0 0.0
    %645 = vmatprep.subr.mxu0 0.0
    %646 = vmatpush1.msra.mxu0 0.0
    %647 = vmatprep.subr.mxu0 0.0
    %648 = vmatpush1.msra.mxu0 0.0
    %649 = vmatprep.subr.mxu0 0.0
    %650 = vmatpush1.msra.mxu0 0.0
    %651 = vmatprep.subr.mxu0 0.0
    %652 = vmatpush1.msra.mxu0 0.0
    %653 = vmatprep.subr.mxu0 0.0
    %654 = vmatpush1.msra.mxu0 0.0
    %655 = vmatprep.subr.mxu0 0.0
    %656 = vmatpush1.msra.mxu0 0.0
    %657 = vmatprep.subr.mxu0 0.0
    %658 = vmatpush1.msra.mxu0 0.0
    %659 = vmatprep.subr.mxu0 0.0
    %660 = vmatpush1.msra.mxu0 0.0
    %661 = vmatprep.subr.mxu0 0.0
    %662 = vmatpush1.msra.mxu0 0.0
    %663 = vmatprep.mubr.f32.mxu0 0.0
    %664 = vmatmul.mubr.f32.gmra.mrb[0].mxu0 %v594
    %v665 = vpop.f32.mrb[0].mxu0
    %v666 = vadd.f32 0.0, %v665
    %v667 = vpop.f32.mrb[0].mxu0
    %668 = vmatprep.mubr.f32.mxu0 0.0
    %669 = vmatmul.mubr.f32.gmra.mrb[0].mxu0 %v597
    %v670 = vpop.f32.mrb[0].mxu0
    %v671 = vadd.f32 0.0, %v670
    %v672 = vpop.f32.mrb[0].mxu0
    %673 = vdwg.mxu0
    %v674 = vadd.f32 %v579, %v666
    %v675 = vadd.f32 %v584, %v671
    %s676 = scalar_lea.vmem %s3, 48
    %v677 = vld [vmem:[%s676] sm:$0xff]
    %v678 = vld [vmem:[%s676 + $0x8] sm:$0xff]
    %679 = vrot.lane.b32.xlu0 %v415, 122
    %v680 = vpop.permute.xlu0 %679
    %v683 = vsel %vm372, %v677, 0
    %v686 = vsel %vm372, %v678, 0
    %688 = vmatprep.subr.mxu0 0.0
    %689 = vmatpush1.msra.mxu0 %v680
    %690 = vmatprep.subr.mxu0 0.0
    %691 = vmatpush1.msra.mxu0 0.0
    %692 = vmatprep.subr.mxu0 0.0
    %693 = vmatpush1.msra.mxu0 0.0
    %694 = vmatprep.subr.mxu0 0.0
    %695 = vmatpush1.msra.mxu0 0.0
    %696 = vmatprep.subr.mxu0 0.0
    %697 = vmatpush1.msra.mxu0 0.0
    %698 = vmatprep.subr.mxu0 0.0
    %699 = vmatpush1.msra.mxu0 0.0
    %700 = vmatprep.subr.mxu0 0.0
    %701 = vmatpush1.msra.mxu0 0.0
    %702 = vmatprep.subr.mxu0 0.0
    %703 = vmatpush1.msra.mxu0 0.0
    %704 = vmatprep.subr.mxu0 0.0
    %705 = vmatpush1.msra.mxu0 0.0
    %706 = vmatprep.subr.mxu0 0.0
    %707 = vmatpush1.msra.mxu0 0.0
    %708 = vmatprep.subr.mxu0 0.0
    %709 = vmatpush1.msra.mxu0 0.0
    %710 = vmatprep.subr.mxu0 0.0
    %711 = vmatpush1.msra.mxu0 0.0
    %712 = vmatprep.subr.mxu0 0.0
    %713 = vmatpush1.msra.mxu0 0.0
    %714 = vmatprep.subr.mxu0 0.0
    %715 = vmatpush1.msra.mxu0 0.0
    %716 = vmatprep.subr.mxu0 0.0
    %717 = vmatpush1.msra.mxu0 0.0
    %718 = vmatprep.subr.mxu0 0.0
    %719 = vmatpush1.msra.mxu0 0.0
    %720 = vmatprep.subr.mxu0 0.0
    %721 = vmatpush1.msra.mxu0 0.0
    %722 = vmatprep.subr.mxu0 0.0
    %723 = vmatpush1.msra.mxu0 0.0
    %724 = vmatprep.subr.mxu0 0.0
    %725 = vmatpush1.msra.mxu0 0.0
    %726 = vmatprep.subr.mxu0 0.0
    %727 = vmatpush1.msra.mxu0 0.0
    %728 = vmatprep.subr.mxu0 0.0
    %729 = vmatpush1.msra.mxu0 0.0
    %730 = vmatprep.subr.mxu0 0.0
    %731 = vmatpush1.msra.mxu0 0.0
    %732 = vmatprep.subr.mxu0 0.0
    %733 = vmatpush1.msra.mxu0 0.0
    %734 = vmatprep.subr.mxu0 0.0
    %735 = vmatpush1.msra.mxu0 0.0
    %736 = vmatprep.subr.mxu0 0.0
    %737 = vmatpush1.msra.mxu0 0.0
    %738 = vmatprep.subr.mxu0 0.0
    %739 = vmatpush1.msra.mxu0 0.0
    %740 = vmatprep.subr.mxu0 0.0
    %741 = vmatpush1.msra.mxu0 0.0
    %742 = vmatprep.subr.mxu0 0.0
    %743 = vmatpush1.msra.mxu0 0.0
    %744 = vmatprep.subr.mxu0 0.0
    %745 = vmatpush1.msra.mxu0 0.0
    %746 = vmatprep.subr.mxu0 0.0
    %747 = vmatpush1.msra.mxu0 0.0
    %748 = vmatprep.subr.mxu0 0.0
    %749 = vmatpush1.msra.mxu0 0.0
    %750 = vmatprep.subr.mxu0 0.0
    %751 = vmatpush1.msra.mxu0 0.0
    %752 = vmatprep.mubr.f32.mxu0 0.0
    %753 = vmatmul.mubr.f32.gmra.mrb[0].mxu0 %v683
    %v754 = vpop.f32.mrb[0].mxu0
    %v755 = vadd.f32 0.0, %v754
    %v756 = vpop.f32.mrb[0].mxu0
    %757 = vmatprep.mubr.f32.mxu0 0.0
    %758 = vmatmul.mubr.f32.gmra.mrb[0].mxu0 %v686
    %v759 = vpop.f32.mrb[0].mxu0
    %v760 = vadd.f32 0.0, %v759
    %v761 = vpop.f32.mrb[0].mxu0
    %762 = vdwg.mxu0
    %v763 = vadd.f32 %v674, %v755
    %v764 = vadd.f32 %v675, %v760
    %v766 = vrot.slane %v763, 4
    %v768 = vadd.f32 %v763, %v766
    %v770 = vrot.slane %v764, 4
    %v772 = vadd.f32 %v764, %v770
    %v773 = vadd.f32 %v768, %v772
    %v774 = vmul.f32 %v763, %v763
    %v776 = vrot.slane %v774, 4
    %v778 = vadd.f32 %v774, %v776
    %v779 = vmul.f32 %v764, %v764
    %v781 = vrot.slane %v779, 4
    %v783 = vadd.f32 %v779, %v781
    %v784 = vadd.f32 %v778, %v783
    %vm785 = vcmask 11264
    %v786 = vsel %vm785, %v773, 0.0
    %787 = vadd.xlane.f32.xlu0 %v786
    %v788 = vpop.xlane.xlu0 %787
    %v789 = vmul.f32 %v788, 0.125
    %v790 = vsel %vm785, %v784, 0.0
    %791 = vadd.xlane.f32.xlu0 %v790
    %v792 = vpop.xlane.xlu0 %791
    %v793 = vmul.f32 %v792, 0.125
    %v794 = vmul.f32 %v789, %v789
    %v795 = vsub.f32 %v793, %v794
    %v796 = vld [vmem:[%s5] sm:$0xf]
    %v797 = vadd.f32 %v795, 1e-05
    %v798 = vrsqrt.pop %v797
    %v799 = vmul.f32 %v796, %v798
    %s800 = scalar_lea.vmem %s5, 4
    %v801 = vld [vmem:[%s800] sm:$0xf]
    %v802 = vmul.f32 %v789, %v799
    %v803 = vsub.f32 %v801, %v802
    %805 = vset.pattern.permute.xlu0 0
    %806 = vperm.xlu0 %805, %v799
    %v807 = vpop.permute.xlu0 %806
    %v809 = vmul.f32 %v763, %v807
    %811 = vset.pattern.permute.xlu0 0
    %812 = vperm.xlu0 %811, %v803
    %v813 = vpop.permute.xlu0 %812
    %v815 = vadd.f32 %v809, %v813
    %v816 = vrot.slane %v807, 4
    %v818 = vmul.f32 %v763, %v816
    %v819 = vrot.slane %v813, 4
    %v821 = vadd.f32 %v818, %v819
    %v822 = vmul.f32 %v764, %v807
    %v823 = vadd.f32 %v822, %v813
    %v824 = vmul.f32 %v764, %v816
    %v825 = vadd.f32 %v824, %v819
    %v827 = vrot.slane %v821, 4
    %v829 = vmax.f32 %v815, %v827
    %v831 = vrot.slane %v825, 4
    %v833 = vmax.f32 %v823, %v831
    %v834 = vmax.f32 %v829, %v833
    %vm835 = vcmp.gt.f32.partialorder %v834, 0.0
    %v836 = vstv %s40
    %v837 = vmul.f32 %v836, %v834
    %v838 = vsel %vm835, %v834, %v837
    %v839 = vld [vmem:[%s0] sm:$0xf]
    %v840 = vmul.f32 %v839, %v838
    %v841 = vadd.f32 %v840, %v839
    %842 = vst.msk [vmem:[%s7] sm:$0xf] %vm785, %v841
    // Predicated region
    $region34: #{tpu_custom_call.1} parent=1 // pred_check
      _
    $region35: #{tpu_custom_call.1} parent=1 // pred_check_branch
      %844 = sbr.rel (0) target = $region37
    $region36: #{tpu_custom_call.1} parent=1 // pred_region
      _
    $region37: #{tpu_custom_call.1} parent=1 // pred_fallthru
      _
    // Predicated region
    $region38: #{tpu_custom_call.1} parent=1 // pred_check
      _
    $region39: #{tpu_custom_call.1} parent=1 // pred_check_branch
      %846 = sbr.rel (0) target = $region41
    $region40: #{tpu_custom_call.1} parent=1 // pred_region
      _
    $region41: #{tpu_custom_call.1} parent=1 // pred_fallthru
      _
    %847 = vsyncpa [#allocation3], 1

</llo_original>
